<compile_context>
chip_gen: v6e
topology: v6e:2x2x1
jax: 0.10.0
libtpu: 0.0.40
codegen_flags: <defaults>
</compile_context>

<pallas_src>
import functools
from math import gcd

import jax
import jax.numpy as jnp
from jax.experimental import pallas as pl
from jax.experimental.pallas import tpu as pltpu


def _linear_gn_relu_kernel(x_ref, wt_ref, atm_ref, a_ref, gamma_ref, beta_ref, o_ref,
                           *, eps, act):
    # x_ref     : (TN, n_in)     bf16  — TN rows of the (flattened) batch
    # wt_ref    : (n_in, n_out)  bf16  — transposed linear weight, resident
    # atm_ref   : (n_out, G)     f32   — one-hot (channel -> group) / cpg, resident
    # a_ref     : (G, n_out)     f32   — one-hot (group -> channels), resident
    # gamma/beta: (1, n_out)     f32   — resident
    # o_ref     : (TN, n_out)    f32
    # ---- Linear (bias=False): one MXU matmul, bf16 operands, f32 accumulation ----
    z = jnp.dot(x_ref[...], wt_ref[...],
                preferred_element_type=jnp.float32)                       # (TN, n_out)

    # ---- GroupNorm over channels (per row, per group), centered variance ----
    # atm already carries the 1/channels_per_group factor, so z @ atm = group mean.
    mean_g = jnp.dot(z, atm_ref[...], preferred_element_type=jnp.float32)     # (TN, G)
    mean_c = jnp.dot(mean_g, a_ref[...], preferred_element_type=jnp.float32)  # (TN, n_out)
    d = z - mean_c
    var_g = jnp.dot(d * d, atm_ref[...], preferred_element_type=jnp.float32)  # (TN, G)
    var_g = jnp.maximum(var_g, 0.0)                                   # guard vs rounding
    inv_std_g = jax.lax.rsqrt(var_g + eps)
    inv_std_c = jnp.dot(inv_std_g, a_ref[...], preferred_element_type=jnp.float32)

    y = d * inv_std_c * gamma_ref[...] + beta_ref[...]
    if act:
        y = jnp.maximum(y, 0.0)                                        # ReLU
    o_ref[...] = y.astype(o_ref.dtype)


def linear_gn_relu(x, weight, gamma, beta, *, ng=32, act=True, eps=1e-5,
                   block_rows=128, matmul_dtype=jnp.bfloat16):
    """x: (N, n_in) f32; weight: (n_out, n_in); gamma/beta: (n_out,)."""
    N, n_in = x.shape
    n_out = weight.shape[0]
    G = gcd(ng, n_out)
    cpg = n_out // G

    # Row tile: multiple of 8 sublanes; small batches collapse into one grid step.
    TN = min(block_rows, ((N + 7) // 8) * 8)
    Np = ((N + TN - 1) // TN) * TN
    xp = x if Np == N else jnp.pad(x, ((0, Np - N), (0, 0)))

    # Wrapper-side layout plumbing / casts (no hoisted compute): bf16 MXU operands.
    xp = xp.astype(matmul_dtype)
    wt = jnp.transpose(weight).astype(matmul_dtype)                   # (n_in, n_out)
    grp_of_chan = jnp.arange(n_out) // cpg
    A = (grp_of_chan[None, :] == jnp.arange(G)[:, None]).astype(jnp.float32)  # (G, n_out)
    ATm = jnp.transpose(A) * (1.0 / float(cpg))                       # (n_out, G), mean-scaled
    gamma2 = gamma.reshape(1, n_out).astype(jnp.float32)
    beta2 = beta.reshape(1, n_out).astype(jnp.float32)

    kernel = functools.partial(_linear_gn_relu_kernel, eps=float(eps), act=act)

    flops = (2 * Np * n_in * n_out          # linear
             + 2 * 4 * Np * n_out * G       # four grouped-reduction / broadcast matmuls
             + 8 * Np * n_out)              # elementwise norm/affine/relu
    bytes_accessed = (Np * n_in * 2 + n_in * n_out * 2 + Np * n_out * 4
                      + 2 * G * n_out * 4 + 2 * n_out * 4)

    out = pl.pallas_call(
        kernel,
        out_shape=jax.ShapeDtypeStruct((Np, n_out), jnp.float32),
        grid_spec=pltpu.PrefetchScalarGridSpec(
            num_scalar_prefetch=0,
            grid=(Np // TN,),
            in_specs=[
                pl.BlockSpec((TN, n_in), lambda i: (i, 0)),
                pl.BlockSpec((n_in, n_out), lambda i: (0, 0)),   # resident
                pl.BlockSpec((n_out, G), lambda i: (0, 0)),      # resident
                pl.BlockSpec((G, n_out), lambda i: (0, 0)),      # resident
                pl.BlockSpec((1, n_out), lambda i: (0, 0)),      # resident
                pl.BlockSpec((1, n_out), lambda i: (0, 0)),      # resident
            ],
            out_specs=pl.BlockSpec((TN, n_out), lambda i: (i, 0)),
        ),
        compiler_params=pltpu.CompilerParams(
            dimension_semantics=("parallel",)),
        cost_estimate=pl.CostEstimate(
            flops=int(flops),
            transcendentals=int(Np * G),
            bytes_accessed=int(bytes_accessed)),
    )(xp, wt, ATm, A, gamma2, beta2)

    return out[:N] if Np != N else out


def _reference(x, weight, gamma, beta, *, ng=32, act=True, eps=1e-5,
               matmul_dtype=jnp.bfloat16):
    """Pure-JAX reference mirroring torch Linear->GroupNorm->ReLU (bf16 matmul
    operands to match the kernel's MXU dtype, f32 everywhere else)."""
    n_out = weight.shape[0]
    G = gcd(ng, n_out)
    z = jnp.dot(x.astype(matmul_dtype), jnp.transpose(weight).astype(matmul_dtype),
                preferred_element_type=jnp.float32)                   # (N, n_out)
    N = z.shape[0]
    zg = z.reshape(N, G, n_out // G)
    mean = zg.mean(axis=-1, keepdims=True)
    var = ((zg - mean) ** 2).mean(axis=-1, keepdims=True)             # biased, like torch GN
    zg = (zg - mean) * jax.lax.rsqrt(var + eps)
    y = zg.reshape(N, n_out) * gamma[None, :] + beta[None, :]
    if act:
        y = jnp.maximum(y, 0.0)
    return y


if __name__ == "__main__":
    # Rows = 256 (e.g. graph/actor nodes), n_in = 64, n_out = 128 (lane-dense),
    # ng = 32 -> G = gcd(32, 128) = 32 groups of 4 channels. Grid = 2 steps x 128 rows.
    N, n_in, n_out, ng = 256, 64, 128, 32
    key = jax.random.PRNGKey(0)
    kx, kw, kg, kb = jax.random.split(key, 4)
    x = jax.random.normal(kx, (N, n_in), dtype=jnp.float32)
    weight = 0.1 * jax.random.normal(kw, (n_out, n_in), dtype=jnp.float32)
    gamma = 1.0 + 0.1 * jax.random.normal(kg, (n_out,), dtype=jnp.float32)
    beta = 0.1 * jax.random.normal(kb, (n_out,), dtype=jnp.float32)

    out = linear_gn_relu(x, weight, gamma, beta, ng=ng, act=True)
    out = jax.block_until_ready(out)

    ref = _reference(x, weight, gamma, beta, ng=ng, act=True)
    assert out.shape == (N, n_out)
    err = float(jnp.max(jnp.abs(out - ref)))
    assert err < 1e-2, f"mismatch vs reference: max abs err = {err}"
    print("KERNEL_OK")
</pallas_src>

<mosaic_0001>
module attributes {stable_mosaic.version = 11 : i64} {
  func.func @_linear_gn_relu_kernel(%arg0: i32, %arg1: memref<128x64xbf16, #tpu.memory_space<vmem>>, %arg2: memref<64x128xbf16, #tpu.memory_space<vmem>>, %arg3: memref<128x32xf32, #tpu.memory_space<vmem>>, %arg4: memref<32x128xf32, #tpu.memory_space<vmem>>, %arg5: memref<1x128xf32, #tpu.memory_space<vmem>>, %arg6: memref<1x128xf32, #tpu.memory_space<vmem>>, %arg7: memref<128x128xf32, #tpu.memory_space<vmem>>) attributes {dimension_semantics = [#tpu.dimension_semantics<parallel>], iteration_bounds = array<i64: 2>, scalar_prefetch = 0 : i64, scratch_operands = 0 : i64, tpu.core_type = #tpu.core_type<tc>, window_params = [{transform_indices = @transform_0, window_bounds = array<i64: 128, 64>}, {pipeline_mode = #tpu.pipeline_mode<synchronous>, transform_indices = @transform_1, window_bounds = array<i64: 64, 128>}, {pipeline_mode = #tpu.pipeline_mode<synchronous>, transform_indices = @transform_2, window_bounds = array<i64: 128, 32>}, {pipeline_mode = #tpu.pipeline_mode<synchronous>, transform_indices = @transform_3, window_bounds = array<i64: 32, 128>}, {pipeline_mode = #tpu.pipeline_mode<synchronous>, transform_indices = @transform_4, window_bounds = array<i64: 1, 128>}, {pipeline_mode = #tpu.pipeline_mode<synchronous>, transform_indices = @transform_5, window_bounds = array<i64: 1, 128>}, {transform_indices = @transform_6, window_bounds = array<i64: 128, 128>}]} {
    %c0 = arith.constant 0 : index
    %c0_0 = arith.constant 0 : index
    %0 = vector.load %arg1[%c0, %c0_0] : memref<128x64xbf16, #tpu.memory_space<vmem>>, vector<128x64xbf16>
    %c0_1 = arith.constant 0 : index
    %c0_2 = arith.constant 0 : index
    %1 = vector.load %arg2[%c0_1, %c0_2] : memref<64x128xbf16, #tpu.memory_space<vmem>>, vector<64x128xbf16>
    %cst = arith.constant dense<0.000000e+00> : vector<128x128xf32>
    %2 = tpu.matmul %0, %1, %cst {dimension_numbers = #tpu.dot_dimension_numbers<[1], [0], [0], [1], [0, 0, 1, 1], [], []>} : vector<128x64xbf16>, vector<64x128xbf16>, vector<128x128xf32> -> vector<128x128xf32>
    %c0_3 = arith.constant 0 : index
    %c0_4 = arith.constant 0 : index
    %3 = vector.load %arg3[%c0_3, %c0_4] : memref<128x32xf32, #tpu.memory_space<vmem>>, vector<128x32xf32>
    %cst_5 = arith.constant dense<0.000000e+00> : vector<128x32xf32>
    %4 = tpu.matmul %2, %3, %cst_5 {dimension_numbers = #tpu.dot_dimension_numbers<[1], [0], [0], [1], [0, 0, 1, 1], [], []>} : vector<128x128xf32>, vector<128x32xf32>, vector<128x32xf32> -> vector<128x32xf32>
    %c0_6 = arith.constant 0 : index
    %c0_7 = arith.constant 0 : index
    %5 = vector.load %arg4[%c0_6, %c0_7] : memref<32x128xf32, #tpu.memory_space<vmem>>, vector<32x128xf32>
    %cst_8 = arith.constant dense<0.000000e+00> : vector<128x128xf32>
    %6 = tpu.matmul %4, %5, %cst_8 {dimension_numbers = #tpu.dot_dimension_numbers<[1], [0], [0], [1], [0, 0, 1, 1], [], []>} : vector<128x32xf32>, vector<32x128xf32>, vector<128x128xf32> -> vector<128x128xf32>
    %7 = arith.subf %2, %6 : vector<128x128xf32>
    %8 = arith.mulf %7, %7 : vector<128x128xf32>
    %c0_9 = arith.constant 0 : index
    %c0_10 = arith.constant 0 : index
    %9 = vector.load %arg3[%c0_9, %c0_10] : memref<128x32xf32, #tpu.memory_space<vmem>>, vector<128x32xf32>
    %cst_11 = arith.constant dense<0.000000e+00> : vector<128x32xf32>
    %10 = tpu.matmul %8, %9, %cst_11 {dimension_numbers = #tpu.dot_dimension_numbers<[1], [0], [0], [1], [0, 0, 1, 1], [], []>} : vector<128x128xf32>, vector<128x32xf32>, vector<128x32xf32> -> vector<128x32xf32>
    %cst_12 = arith.constant 0.000000e+00 : f32
    %11 = vector.broadcast %cst_12 : f32 to vector<128x32xf32>
    %12 = arith.maximumf %10, %11 : vector<128x32xf32>
    %cst_13 = arith.constant 9.99999974E-6 : f32
    %13 = vector.broadcast %cst_13 : f32 to vector<128x32xf32>
    %14 = arith.addf %12, %13 : vector<128x32xf32>
    %15 = math.rsqrt %14 : vector<128x32xf32>
    %c0_14 = arith.constant 0 : index
    %c0_15 = arith.constant 0 : index
    %16 = vector.load %arg4[%c0_14, %c0_15] : memref<32x128xf32, #tpu.memory_space<vmem>>, vector<32x128xf32>
    %cst_16 = arith.constant dense<0.000000e+00> : vector<128x128xf32>
    %17 = tpu.matmul %15, %16, %cst_16 {dimension_numbers = #tpu.dot_dimension_numbers<[1], [0], [0], [1], [0, 0, 1, 1], [], []>} : vector<128x32xf32>, vector<32x128xf32>, vector<128x128xf32> -> vector<128x128xf32>
    %18 = arith.mulf %7, %17 : vector<128x128xf32>
    %c0_17 = arith.constant 0 : index
    %c0_18 = arith.constant 0 : index
    %19 = vector.load %arg5[%c0_17, %c0_18] : memref<1x128xf32, #tpu.memory_space<vmem>>, vector<1x128xf32>
    %20 = vector.broadcast %19 : vector<1x128xf32> to vector<128x128xf32>
    %21 = arith.mulf %18, %20 : vector<128x128xf32>
    %c0_19 = arith.constant 0 : index
    %c0_20 = arith.constant 0 : index
    %22 = vector.load %arg6[%c0_19, %c0_20] : memref<1x128xf32, #tpu.memory_space<vmem>>, vector<1x128xf32>
    %23 = vector.broadcast %22 : vector<1x128xf32> to vector<128x128xf32>
    %24 = arith.addf %21, %23 : vector<128x128xf32>
    %cst_21 = arith.constant 0.000000e+00 : f32
    %25 = vector.broadcast %cst_21 : f32 to vector<128x128xf32>
    %26 = arith.maximumf %24, %25 : vector<128x128xf32>
    %c0_22 = arith.constant 0 : index
    %c0_23 = arith.constant 0 : index
    %27 = vector.load %arg7[%c0_22, %c0_23] : memref<128x128xf32, #tpu.memory_space<vmem>>, vector<128x128xf32>
    tpu.vector_store %arg7[%c0_22, %c0_23], %26 {strides = array<i32>} : memref<128x128xf32, #tpu.memory_space<vmem>>, vector<128x128xf32>,
    return
  }
  func.func @transform_0(%arg0: i32) -> (i32, i32) {
    %c0_i32 = arith.constant 0 : i32
    %c0_i32_0 = arith.constant 0 : i32
    return %arg0, %c0_i32 : i32, i32
  }
  func.func @transform_1(%arg0: i32) -> (i32, i32) {
    %c0_i32 = arith.constant 0 : i32
    %c0_i32_0 = arith.constant 0 : i32
    %c0_i32_1 = arith.constant 0 : i32
    return %c0_i32, %c0_i32_0 : i32, i32
  }
  func.func @transform_2(%arg0: i32) -> (i32, i32) {
    %c0_i32 = arith.constant 0 : i32
    %c0_i32_0 = arith.constant 0 : i32
    %c0_i32_1 = arith.constant 0 : i32
    return %c0_i32, %c0_i32_0 : i32, i32
  }
  func.func @transform_3(%arg0: i32) -> (i32, i32) {
    %c0_i32 = arith.constant 0 : i32
    %c0_i32_0 = arith.constant 0 : i32
    %c0_i32_1 = arith.constant 0 : i32
    return %c0_i32, %c0_i32_0 : i32, i32
  }
  func.func @transform_4(%arg0: i32) -> (i32, i32) {
    %c0_i32 = arith.constant 0 : i32
    %c0_i32_0 = arith.constant 0 : i32
    %c0_i32_1 = arith.constant 0 : i32
    return %c0_i32, %c0_i32_0 : i32, i32
  }
  func.func @transform_5(%arg0: i32) -> (i32, i32) {
    %c0_i32 = arith.constant 0 : i32
    %c0_i32_0 = arith.constant 0 : i32
    %c0_i32_1 = arith.constant 0 : i32
    return %c0_i32, %c0_i32_0 : i32, i32
  }
  func.func @transform_6(%arg0: i32) -> (i32, i32) {
    %c0_i32 = arith.constant 0 : i32
    %c0_i32_0 = arith.constant 0 : i32
    return %arg0, %c0_i32 : i32, i32
  }
}

</mosaic_0001>

<llo_original>
// kernel: tpu_custom_call.1
$region0: #{tpu_custom_call.1}
  #allocation0 [shape = 'u32[]', space=smem, size = 0x4, offset = 0x4, fixed_abs, tag = 'smem constant byte address 0x4 - core index']
  #allocation1 [shape = 'u32[144,128]{1,0:T(1,128)}', space=vmem, size = 0x12000, scoped, tag = 'internal scratch']
  %s0 = inlined_call_operand.vmem [shape: bf16[256,64], index: 0, kind: input, shape index: {}]
  %s1 = inlined_call_operand.vmem [shape: bf16[64,128], index: 1, kind: input, shape index: {}]
  %s2 = inlined_call_operand.vmem [shape: f32[128,32], index: 2, kind: input, shape index: {}]
  %s3 = inlined_call_operand.vmem [shape: f32[32,128], index: 3, kind: input, shape index: {}]
  %s4 = inlined_call_operand.vmem [shape: f32[1,128], index: 4, kind: input, shape index: {}]
  %s5 = inlined_call_operand.vmem [shape: f32[1,128], index: 5, kind: input, shape index: {}]
  %s6 = inlined_call_operand.hbm [shape: f32[256,128], index: 6, kind: output, shape index: {}]
  %s7 = sld [smem:[#allocation0]]
  $region57: #{tpu_custom_call.1} parent=0
    _
  %s9 = ssub.s32 1, %s7
  %s10 = scalar_select 0, %s9, %s7
  $region1: #{tpu_custom_call.1} parent=0
    #allocation2 [shape = 'u8[131072]{0}', space=vmem, size = 0x20000, scoped, tag = 'output window, operand 0']
    #allocation3 [shape = 's32[2]{0}', space=sflag, size = 0x8, scoped, tag = 'scoped memory for tpu_custom_call.1']
    %11 = vsyncpa [#allocation3], 0
    %s12 = scalar_lea.sflag [#allocation3], 1
    %13 = vsyncpa %s12, 0
    loop: start=0, step=1, limit=4
    $region2: #{tpu_custom_call.1} parent=1 // loop_pre_header
      _
    $region3: #{tpu_custom_call.1} parent=1 // loop_header
      %s15 = sphi 0, %s19
      %p16 = scmp.ge.s32.totalorder %s15, 4
      %s25 = sphi 0, %s27
      %s28 = sphi 0, %s25
      %s29 = sphi 0, %s28
      %s45 = sphi 0, %s29
      %s49 = sphi 0, %s49
      %s51 = sphi 0, %s49
      %s52 = sphi 0, %s51
      %s66 = sphi 0, %s52
      %s70 = sphi 0, %s70
      %s72 = sphi 0, %s70
      %s73 = sphi 0, %s72
      %s87 = sphi 0, %s73
      %s91 = sphi 0, %s91
      %s93 = sphi 0, %s91
      %s94 = sphi 0, %s93
      %s108 = sphi 0, %s94
      %s112 = sphi 0, %s112
      %s114 = sphi 0, %s112
      %s115 = sphi 0, %s114
      %s129 = sphi 0, %s115
      %s133 = sphi 0, %s133
      %s135 = sphi 0, %s133
      %s136 = sphi 0, %s135
      %s150 = sphi 0, %s136
      %s156 = sphi 0, %s158
      %s159 = sphi 0, %s156
      %s160 = sphi 0, %s159
      %s176 = sphi 0, %s160
    $region4: #{tpu_custom_call.1} parent=1 // loop_header_branch
      %18 = sbr.rel (%p16) target = $region8
    $region5: #{tpu_custom_call.1} parent=1 // loop_body
      %s20 = ssub.s32 %s15, 1
      %s21 = ssub.s32 %s15, 2
      %s22 = sadd.s32 %s15, 1
      %s23 = ssub.s32 %s15, %s22
      %p24 = scmp.eq.s32.totalorder %s23, 0
      %s26 = sadd.s32 %s25, 1
      %s27 = scalar_select %p24, %s25, %s26
      %p30 = pneg %p24
      %p31 = scmp.eq.s32.totalorder %s15, 1
      %p32 = por %p30, %p31
      %p33 = scmp.ne.s32.totalorder %s25, %s28
      %p34 = scmp.eq.s32.totalorder %s15, 0
      %p35 = por %p33, %p34
      %p36 = scmp.ne.s32.totalorder %s25, %s28
      %p37 = scmp.eq.s32.totalorder %s20, 1
      %p38 = por %p36, %p37
      %p39 = scmp.ne.s32.totalorder %s28, %s29
      %p40 = scmp.eq.s32.totalorder %s20, 0
      %p41 = por %p39, %p40
      %p42 = scmp.ne.s32.totalorder %s28, %s29
      %p43 = scmp.eq.s32.totalorder %s21, 1
      %p44 = por %p42, %p43
      %p46 = scmp.ne.s32.totalorder %s29, %s45
      %p47 = scmp.eq.s32.totalorder %s21, 0
      %p48 = por %p46, %p47
      %s50 = sadd.s32 %s49, 1
      %p53 = scmp.eq.s32.totalorder %s15, 1
      %p54 = scmp.ne.s32.totalorder %s49, %s51
      %p55 = scmp.eq.s32.totalorder %s15, 0
      %p56 = por %p54, %p55
      %p57 = scmp.ne.s32.totalorder %s49, %s51
      %p58 = scmp.eq.s32.totalorder %s20, 1
      %p59 = por %p57, %p58
      %p60 = scmp.ne.s32.totalorder %s51, %s52
      %p61 = scmp.eq.s32.totalorder %s20, 0
      %p62 = por %p60, %p61
      %p63 = scmp.ne.s32.totalorder %s51, %s52
      %p64 = scmp.eq.s32.totalorder %s21, 1
      %p65 = por %p63, %p64
      %p67 = scmp.ne.s32.totalorder %s52, %s66
      %p68 = scmp.eq.s32.totalorder %s21, 0
      %p69 = por %p67, %p68
      %s71 = sadd.s32 %s70, 1
      %p74 = scmp.eq.s32.totalorder %s15, 1
      %p75 = scmp.ne.s32.totalorder %s70, %s72
      %p76 = scmp.eq.s32.totalorder %s15, 0
      %p77 = por %p75, %p76
      %p78 = scmp.ne.s32.totalorder %s70, %s72
      %p79 = scmp.eq.s32.totalorder %s20, 1
      %p80 = por %p78, %p79
      %p81 = scmp.ne.s32.totalorder %s72, %s73
      %p82 = scmp.eq.s32.totalorder %s20, 0
      %p83 = por %p81, %p82
      %p84 = scmp.ne.s32.totalorder %s72, %s73
      %p85 = scmp.eq.s32.totalorder %s21, 1
      %p86 = por %p84, %p85
      %p88 = scmp.ne.s32.totalorder %s73, %s87
      %p89 = scmp.eq.s32.totalorder %s21, 0
      %p90 = por %p88, %p89
      %s92 = sadd.s32 %s91, 1
      %p95 = scmp.eq.s32.totalorder %s15, 1
      %p96 = scmp.ne.s32.totalorder %s91, %s93
      %p97 = scmp.eq.s32.totalorder %s15, 0
      %p98 = por %p96, %p97
      %p99 = scmp.ne.s32.totalorder %s91, %s93
      %p100 = scmp.eq.s32.totalorder %s20, 1
      %p101 = por %p99, %p100
      %p102 = scmp.ne.s32.totalorder %s93, %s94
      %p103 = scmp.eq.s32.totalorder %s20, 0
      %p104 = por %p102, %p103
      %p105 = scmp.ne.s32.totalorder %s93, %s94
      %p106 = scmp.eq.s32.totalorder %s21, 1
      %p107 = por %p105, %p106
      %p109 = scmp.ne.s32.totalorder %s94, %s108
      %p110 = scmp.eq.s32.totalorder %s21, 0
      %p111 = por %p109, %p110
      %s113 = sadd.s32 %s112, 1
      %p116 = scmp.eq.s32.totalorder %s15, 1
      %p117 = scmp.ne.s32.totalorder %s112, %s114
      %p118 = scmp.eq.s32.totalorder %s15, 0
      %p119 = por %p117, %p118
      %p120 = scmp.ne.s32.totalorder %s112, %s114
      %p121 = scmp.eq.s32.totalorder %s20, 1
      %p122 = por %p120, %p121
      %p123 = scmp.ne.s32.totalorder %s114, %s115
      %p124 = scmp.eq.s32.totalorder %s20, 0
      %p125 = por %p123, %p124
      %p126 = scmp.ne.s32.totalorder %s114, %s115
      %p127 = scmp.eq.s32.totalorder %s21, 1
      %p128 = por %p126, %p127
      %p130 = scmp.ne.s32.totalorder %s115, %s129
      %p131 = scmp.eq.s32.totalorder %s21, 0
      %p132 = por %p130, %p131
      %s134 = sadd.s32 %s133, 1
      %p137 = scmp.eq.s32.totalorder %s15, 1
      %p138 = scmp.ne.s32.totalorder %s133, %s135
      %p139 = scmp.eq.s32.totalorder %s15, 0
      %p140 = por %p138, %p139
      %p141 = scmp.ne.s32.totalorder %s133, %s135
      %p142 = scmp.eq.s32.totalorder %s20, 1
      %p143 = por %p141, %p142
      %p144 = scmp.ne.s32.totalorder %s135, %s136
      %p145 = scmp.eq.s32.totalorder %s20, 0
      %p146 = por %p144, %p145
      %p147 = scmp.ne.s32.totalorder %s135, %s136
      %p148 = scmp.eq.s32.totalorder %s21, 1
      %p149 = por %p147, %p148
      %p151 = scmp.ne.s32.totalorder %s136, %s150
      %p152 = scmp.eq.s32.totalorder %s21, 0
      %p153 = por %p151, %p152
      %s154 = ssub.s32 %s15, %s22
      %p155 = scmp.eq.s32.totalorder %s154, 0
      %s157 = sadd.s32 %s156, 1
      %s158 = scalar_select %p155, %s156, %s157
      %p161 = pneg %p155
      %p162 = scmp.eq.s32.totalorder %s15, 1
      %p163 = por %p161, %p162
      %p164 = scmp.ne.s32.totalorder %s156, %s159
      %p165 = scmp.eq.s32.totalorder %s15, 0
      %p166 = por %p164, %p165
      %p167 = scmp.ne.s32.totalorder %s156, %s159
      %p168 = scmp.eq.s32.totalorder %s20, 1
      %p169 = por %p167, %p168
      %p170 = scmp.ne.s32.totalorder %s159, %s160
      %p171 = scmp.eq.s32.totalorder %s20, 0
      %p172 = por %p170, %p171
      %p173 = scmp.ne.s32.totalorder %s159, %s160
      %p174 = scmp.eq.s32.totalorder %s21, 1
      %p175 = por %p173, %p174
      %p177 = scmp.ne.s32.totalorder %s160, %s176
      %p178 = scmp.eq.s32.totalorder %s21, 0
      %p179 = por %p177, %p178
      %p180 = scmp.le.s32.totalorder 1, %s15
      %p181 = scmp.lt.s32.totalorder %s15, 3
      %p182 = pnand %p180, %p181
      %p183 = pneg %p182
      // Predicated region
      $region9: #{tpu_custom_call.1} parent=5 // pred_check
        _
      $region10: #{tpu_custom_call.1} parent=5 // pred_check_branch
        %185 = sbr.rel (%p182) target = $region12
      $region11: #{tpu_custom_call.1} parent=5 // pred_region
        %s186 = ssub.s32 %s15, 1
        // Predicated region
        $region13: #{tpu_custom_call.1} parent=11 // pred_check
          %p187 = pneg %p62
        $region14: #{tpu_custom_call.1} parent=11 // pred_check_branch
          %189 = sbr.rel (%p187) target = $region16
        $region15: #{tpu_custom_call.1} parent=11 // pred_region
          _
        $region16: #{tpu_custom_call.1} parent=11 // pred_fallthru
          _
        // Predicated region
        $region17: #{tpu_custom_call.1} parent=11 // pred_check
          %p190 = pneg %p83
        $region18: #{tpu_custom_call.1} parent=11 // pred_check_branch
          %192 = sbr.rel (%p190) target = $region20
        $region19: #{tpu_custom_call.1} parent=11 // pred_region
          _
        $region20: #{tpu_custom_call.1} parent=11 // pred_fallthru
          _
        // Predicated region
        $region21: #{tpu_custom_call.1} parent=11 // pred_check
          %p193 = pneg %p104
        $region22: #{tpu_custom_call.1} parent=11 // pred_check_branch
          %195 = sbr.rel (%p193) target = $region24
        $region23: #{tpu_custom_call.1} parent=11 // pred_region
          _
        $region24: #{tpu_custom_call.1} parent=11 // pred_fallthru
          _
        // Predicated region
        $region25: #{tpu_custom_call.1} parent=11 // pred_check
          %p196 = pneg %p125
        $region26: #{tpu_custom_call.1} parent=11 // pred_check_branch
          %198 = sbr.rel (%p196) target = $region28
        $region27: #{tpu_custom_call.1} parent=11 // pred_region
          _
        $region28: #{tpu_custom_call.1} parent=11 // pred_fallthru
          _
        // Predicated region
        $region29: #{tpu_custom_call.1} parent=11 // pred_check
          %p199 = pneg %p146
        $region30: #{tpu_custom_call.1} parent=11 // pred_check_branch
          %201 = sbr.rel (%p199) target = $region32
        $region31: #{tpu_custom_call.1} parent=11 // pred_region
          _
        $region32: #{tpu_custom_call.1} parent=11 // pred_fallthru
          _
      $region12: #{tpu_custom_call.1} parent=5 // pred_fallthru
        _
      %p202 = scmp.lt.s32.totalorder %s15, 2
      // Predicated region
      $region33: #{tpu_custom_call.1} parent=5 // pred_check
        %p203 = pneg %p202
      $region34: #{tpu_custom_call.1} parent=5 // pred_check_branch
        %205 = sbr.rel (%p203) target = $region36
      $region35: #{tpu_custom_call.1} parent=5 // pred_region
        // Predicated region
        $region37: #{tpu_custom_call.1} parent=35 // pred_check
          %p206 = pneg %p35
        $region38: #{tpu_custom_call.1} parent=35 // pred_check_branch
          %208 = sbr.rel (%p206) target = $region40
        $region39: #{tpu_custom_call.1} parent=35 // pred_region
          %s209 = smul.u32 16, %s15
          %p210 = scmp.lt.s32.totalorder %s209, 31
          %s211 = scalar_select %p210, %s209, 31
          %s212 = smul.addr %s211, 4
          %s213 = scalar_lea.vmem %s0, %s212
          %s214 = smul.u32 16, %s15
        $region40: #{tpu_custom_call.1} parent=35 // pred_fallthru
          _
      $region36: #{tpu_custom_call.1} parent=5 // pred_fallthru
        _
      %p215 = scmp.le.s32.totalorder 1, %s15
      %p216 = scmp.lt.s32.totalorder %s15, 3
      %p217 = pnand %p215, %p216
      %p218 = pneg %p217
      // Predicated region
      $region41: #{tpu_custom_call.1} parent=5 // pred_check
        _
      $region42: #{tpu_custom_call.1} parent=5 // pred_check_branch
        %220 = sbr.rel (%p217) target = $region44
      $region43: #{tpu_custom_call.1} parent=5 // pred_region
        %s221 = ssub.s32 %s15, 1
        %s222 = smul.u32 16, %s20
        %p223 = scmp.lt.s32.totalorder %s222, 31
        %s224 = scalar_select %p223, %s222, 31
        %s225 = smul.addr %s224, 4
        %s226 = scalar_lea.vmem %s0, %s225
        %p227 = pneg %p41
        %p228 = pneg %p38
        %p229 = pneg %p62
        %p230 = pneg %p59
        %p231 = pneg %p83
        %p232 = pneg %p80
        %p233 = pneg %p104
        %p234 = pneg %p101
        %p235 = pneg %p125
        %p236 = pneg %p122
        %p237 = pneg %p146
        %p238 = pneg %p143
        %p239 = pneg %p172
        %p240 = pneg %p169
        %s241 = sand.u32 %s159, 1
        %s242 = scalar_lea.sflag [#allocation3], %s241
        %s243 = sand.u32 %s159, 1
        %s244 = smul.addr %s243, 128
        %s245 = scalar_lea.vmem [#allocation2], %s244
        %s246 = smul.u32 16, %s20
        %p247 = scmp.lt.s32.totalorder %s246, 31
        %s248 = scalar_select %p247, %s246, 31
        %s249 = smul.addr %s248, 4
        %s250 = scalar_lea.vmem %s0, %s249
        %s251 = smul.u32 16, %s20
        %s252 = smul.u32 16, %s20
        %v254 = vld [vmem:[%s250] sm:$0xf]
        %v255 = vld [vmem:[%s250 + $0x4] sm:$0xf]
        %v256 = vld [vmem:[%s250 + $0x8] sm:$0xf]
        %v257 = vld [vmem:[%s250 + $0xc] sm:$0xf]
        %v258 = vld [vmem:[%s250 + $0x10] sm:$0xf]
        %v259 = vld [vmem:[%s250 + $0x14] sm:$0xf]
        %v260 = vld [vmem:[%s250 + $0x18] sm:$0xf]
        %v261 = vld [vmem:[%s250 + $0x1c] sm:$0xf]
        %v262 = vld [vmem:[%s250 + $0x20] sm:$0xf]
        %v263 = vld [vmem:[%s250 + $0x24] sm:$0xf]
        %v264 = vld [vmem:[%s250 + $0x28] sm:$0xf]
        %v265 = vld [vmem:[%s250 + $0x2c] sm:$0xf]
        %v266 = vld [vmem:[%s250 + $0x30] sm:$0xf]
        %v267 = vld [vmem:[%s250 + $0x34] sm:$0xf]
        %v268 = vld [vmem:[%s250 + $0x38] sm:$0xf]
        %v269 = vld [vmem:[%s250 + $0x3c] sm:$0xf]
        %v270 = vld [vmem:[%s1] sm:$0xf]
        %v271 = vld [vmem:[%s1 + $0x4] sm:$0xf]
        %v272 = vld [vmem:[%s1 + $0x8] sm:$0xf]
        %v273 = vld [vmem:[%s1 + $0xc] sm:$0xf]
        %v274 = vld [vmem:[%s1 + $0x10] sm:$0xf]
        %v275 = vld [vmem:[%s1 + $0x14] sm:$0xf]
        %v276 = vld [vmem:[%s1 + $0x18] sm:$0xf]
        %v277 = vld [vmem:[%s1 + $0x1c] sm:$0xf]
        %v294 = vunpack.c.l.b16 %v254
        %v295 = vunpack.c.l.b16 %v255
        %v296 = vunpack.c.l.b16 %v256
        %v297 = vunpack.c.l.b16 %v257
        %v298 = vunpack.c.l.b16 %v258
        %v299 = vunpack.c.l.b16 %v259
        %v300 = vunpack.c.l.b16 %v260
        %v301 = vunpack.c.l.b16 %v261
        %v302 = vunpack.c.l.b16 %v262
        %v303 = vunpack.c.l.b16 %v263
        %v304 = vunpack.c.l.b16 %v264
        %v305 = vunpack.c.l.b16 %v265
        %v306 = vunpack.c.l.b16 %v266
        %v307 = vunpack.c.l.b16 %v267
        %v308 = vunpack.c.l.b16 %v268
        %v309 = vunpack.c.l.b16 %v269
        %v310 = vpack.c.b16 %v295, %v294
        %v311 = vpack.c.b16 %v297, %v296
        %v312 = vpack.c.b16 %v299, %v298
        %v313 = vpack.c.b16 %v301, %v300
        %v314 = vpack.c.b16 %v303, %v302
        %v315 = vpack.c.b16 %v305, %v304
        %v316 = vpack.c.b16 %v307, %v306
        %v317 = vpack.c.b16 %v309, %v308
        %v326 = vunpack.c.l.b16 %v270
        %v327 = vunpack.c.l.b16 %v271
        %v328 = vunpack.c.l.b16 %v272
        %v329 = vunpack.c.l.b16 %v273
        %v330 = vunpack.c.l.b16 %v274
        %v331 = vunpack.c.l.b16 %v275
        %v332 = vunpack.c.l.b16 %v276
        %v333 = vunpack.c.l.b16 %v277
        %v334 = vpack.c.b16 %v327, %v326
        %v335 = vpack.c.b16 %v329, %v328
        %v336 = vpack.c.b16 %v331, %v330
        %v337 = vpack.c.b16 %v333, %v332
        %vm342 = vcmask 523264
        %v344 = vsel %vm342, %v310, 0
        %v347 = vsel %vm342, %v311, 0
        %v350 = vsel %vm342, %v312, 0
        %v353 = vsel %vm342, %v313, 0
        %v356 = vsel %vm342, %v314, 0
        %v359 = vsel %vm342, %v315, 0
        %v362 = vsel %vm342, %v316, 0
        %v365 = vsel %vm342, %v317, 0
        %367 = vmatprep.subr.bf16.mxu0 0
        %368 = vmatpush1.bf16.msra.mxu0 0
        %369 = vmatprep.subr.bf16.mxu0 0
        %370 = vmatpush1.bf16.msra.mxu0 0
        %371 = vmatprep.subr.bf16.mxu0 0
        %372 = vmatpush1.bf16.msra.mxu0 0
        %373 = vmatprep.subr.bf16.mxu0 0
        %374 = vmatpush1.bf16.msra.mxu0 0
        %375 = vmatprep.subr.bf16.mxu0 0
        %376 = vmatpush1.bf16.msra.mxu0 %v337
        %377 = vmatprep.subr.bf16.mxu0 0
        %378 = vmatpush1.bf16.msra.mxu0 %v336
        %379 = vmatprep.subr.bf16.mxu0 0
        %380 = vmatpush1.bf16.msra.mxu0 %v335
        %381 = vmatprep.subr.bf16.mxu0 0
        %382 = vmatpush1.bf16.msra.mxu0 %v334
        %383 = vmatprep.subr.bf16.mxu0 0
        %384 = vmatpush2.bf16.msra.mxu0 0
        %385 = vmatprep.subr.bf16.mxu0 0
        %386 = vmatpush2.bf16.msra.mxu0 0
        %387 = vmatprep.subr.bf16.mxu0 0
        %388 = vmatpush2.bf16.msra.mxu0 0
        %389 = vmatprep.subr.bf16.mxu0 0
        %390 = vmatpush2.bf16.msra.mxu0 0
        %391 = vmatprep.subr.bf16.mxu0 0
        %392 = vmatpush2.bf16.msra.mxu0 0
        %393 = vmatprep.subr.bf16.mxu0 0
        %394 = vmatpush2.bf16.msra.mxu0 0
        %395 = vmatprep.subr.bf16.mxu0 0
        %396 = vmatpush2.bf16.msra.mxu0 0
        %397 = vmatprep.subr.bf16.mxu0 0
        %398 = vmatpush2.bf16.msra.mxu0 0
        %399 = vmatprep.mubr.bf16.mxu0 0
        %400 = vmatmul.mubr.bf16.gmra.mxu0 %v344
        %v401 = vpop.f32.mrf.mxu0
        %v402 = vadd.f32 0.0, %v401
        %v403 = vpop.f32.mrf.mxu0
        %v404 = vpop.f32.mrf.mxu0
        %v405 = vadd.f32 0.0, %v404
        %v406 = vpop.f32.mrf.mxu0
        %407 = vmatprep.mubr.bf16.mxu0 0
        %408 = vmatmul.mubr.bf16.gmra.mxu0 %v347
        %v409 = vpop.f32.mrf.mxu0
        %v410 = vadd.f32 0.0, %v409
        %v411 = vpop.f32.mrf.mxu0
        %v412 = vpop.f32.mrf.mxu0
        %v413 = vadd.f32 0.0, %v412
        %v414 = vpop.f32.mrf.mxu0
        %415 = vmatprep.mubr.bf16.mxu0 0
        %416 = vmatmul.mubr.bf16.gmra.mxu0 %v350
        %v417 = vpop.f32.mrf.mxu0
        %v418 = vadd.f32 0.0, %v417
        %v419 = vpop.f32.mrf.mxu0
        %v420 = vpop.f32.mrf.mxu0
        %v421 = vadd.f32 0.0, %v420
        %v422 = vpop.f32.mrf.mxu0
        %423 = vmatprep.mubr.bf16.mxu0 0
        %424 = vmatmul.mubr.bf16.gmra.mxu0 %v353
        %v425 = vpop.f32.mrf.mxu0
        %v426 = vadd.f32 0.0, %v425
        %v427 = vpop.f32.mrf.mxu0
        %v428 = vpop.f32.mrf.mxu0
        %v429 = vadd.f32 0.0, %v428
        %v430 = vpop.f32.mrf.mxu0
        %431 = vmatprep.mubr.bf16.mxu0 0
        %432 = vmatmul.mubr.bf16.gmra.mxu0 %v356
        %v433 = vpop.f32.mrf.mxu0
        %v434 = vadd.f32 0.0, %v433
        %v435 = vpop.f32.mrf.mxu0
        %v436 = vpop.f32.mrf.mxu0
        %v437 = vadd.f32 0.0, %v436
        %v438 = vpop.f32.mrf.mxu0
        %439 = vmatprep.mubr.bf16.mxu0 0
        %440 = vmatmul.mubr.bf16.gmra.mxu0 %v359
        %v441 = vpop.f32.mrf.mxu0
        %v442 = vadd.f32 0.0, %v441
        %v443 = vpop.f32.mrf.mxu0
        %v444 = vpop.f32.mrf.mxu0
        %v445 = vadd.f32 0.0, %v444
        %v446 = vpop.f32.mrf.mxu0
        %447 = vmatprep.mubr.bf16.mxu0 0
        %448 = vmatmul.mubr.bf16.gmra.mxu0 %v362
        %v449 = vpop.f32.mrf.mxu0
        %v450 = vadd.f32 0.0, %v449
        %v451 = vpop.f32.mrf.mxu0
        %v452 = vpop.f32.mrf.mxu0
        %v453 = vadd.f32 0.0, %v452
        %v454 = vpop.f32.mrf.mxu0
        %455 = vmatprep.mubr.bf16.mxu0 0
        %456 = vmatmul.mubr.bf16.gmra.mxu0 %v365
        %v457 = vpop.f32.mrf.mxu0
        %v458 = vadd.f32 0.0, %v457
        %v459 = vpop.f32.mrf.mxu0
        %v460 = vpop.f32.mrf.mxu0
        %v461 = vadd.f32 0.0, %v460
        %v462 = vpop.f32.mrf.mxu0
        %463 = vdwg.mxu0
        %v464 = vld [vmem:[%s2] sm:$0xff]
        %v465 = vld [vmem:[%s2 + $0x8] sm:$0xff]
        %v466 = vld [vmem:[%s2 + $0x10] sm:$0xff]
        %v467 = vld [vmem:[%s2 + $0x18] sm:$0xff]
        %v468 = vld [vmem:[%s2 + $0x20] sm:$0xff]
        %v469 = vld [vmem:[%s2 + $0x28] sm:$0xff]
        %v470 = vld [vmem:[%s2 + $0x30] sm:$0xff]
        %v471 = vld [vmem:[%s2 + $0x38] sm:$0xff]
        %v472 = vld [vmem:[%s2 + $0x40] sm:$0xff]
        %v473 = vld [vmem:[%s2 + $0x48] sm:$0xff]
        %v474 = vld [vmem:[%s2 + $0x50] sm:$0xff]
        %v475 = vld [vmem:[%s2 + $0x58] sm:$0xff]
        %v476 = vld [vmem:[%s2 + $0x60] sm:$0xff]
        %v477 = vld [vmem:[%s2 + $0x68] sm:$0xff]
        %v478 = vld [vmem:[%s2 + $0x70] sm:$0xff]
        %v479 = vld [vmem:[%s2 + $0x78] sm:$0xff]
        %480 = vmatprep.subr.mxu0 0.0
        %481 = vmatpush1.msra.mxu0 %v479
        %482 = vmatprep.subr.mxu0 0.0
        %483 = vmatpush1.msra.mxu0 %v478
        %484 = vmatprep.subr.mxu0 0.0
        %485 = vmatpush1.msra.mxu0 %v477
        %486 = vmatprep.subr.mxu0 0.0
        %487 = vmatpush1.msra.mxu0 %v476
        %488 = vmatprep.subr.mxu0 0.0
        %489 = vmatpush1.msra.mxu0 %v475
        %490 = vmatprep.subr.mxu0 0.0
        %491 = vmatpush1.msra.mxu0 %v474
        %492 = vmatprep.subr.mxu0 0.0
        %493 = vmatpush1.msra.mxu0 %v473
        %494 = vmatprep.subr.mxu0 0.0
        %495 = vmatpush1.msra.mxu0 %v472
        %496 = vmatprep.subr.mxu0 0.0
        %497 = vmatpush1.msra.mxu0 %v471
        %498 = vmatprep.subr.mxu0 0.0
        %499 = vmatpush1.msra.mxu0 %v470
        %500 = vmatprep.subr.mxu0 0.0
        %501 = vmatpush1.msra.mxu0 %v469
        %502 = vmatprep.subr.mxu0 0.0
        %503 = vmatpush1.msra.mxu0 %v468
        %504 = vmatprep.subr.mxu0 0.0
        %505 = vmatpush1.msra.mxu0 %v467
        %506 = vmatprep.subr.mxu0 0.0
        %507 = vmatpush1.msra.mxu0 %v466
        %508 = vmatprep.subr.mxu0 0.0
        %509 = vmatpush1.msra.mxu0 %v465
        %510 = vmatprep.subr.mxu0 0.0
        %511 = vmatpush1.msra.mxu0 %v464
        %512 = vmatprep.subr.mxu0 0.0
        %513 = vmatpush2.msra.mxu0 0.0
        %514 = vmatprep.subr.mxu0 0.0
        %515 = vmatpush2.msra.mxu0 0.0
        %516 = vmatprep.subr.mxu0 0.0
        %517 = vmatpush2.msra.mxu0 0.0
        %518 = vmatprep.subr.mxu0 0.0
        %519 = vmatpush2.msra.mxu0 0.0
        %520 = vmatprep.subr.mxu0 0.0
        %521 = vmatpush2.msra.mxu0 0.0
        %522 = vmatprep.subr.mxu0 0.0
        %523 = vmatpush2.msra.mxu0 0.0
        %524 = vmatprep.subr.mxu0 0.0
        %525 = vmatpush2.msra.mxu0 0.0
        %526 = vmatprep.subr.mxu0 0.0
        %527 = vmatpush2.msra.mxu0 0.0
        %528 = vmatprep.subr.mxu0 0.0
        %529 = vmatpush2.msra.mxu0 0.0
        %530 = vmatprep.subr.mxu0 0.0
        %531 = vmatpush2.msra.mxu0 0.0
        %532 = vmatprep.subr.mxu0 0.0
        %533 = vmatpush2.msra.mxu0 0.0
        %534 = vmatprep.subr.mxu0 0.0
        %535 = vmatpush2.msra.mxu0 0.0
        %536 = vmatprep.subr.mxu0 0.0
        %537 = vmatpush2.msra.mxu0 0.0
        %538 = vmatprep.subr.mxu0 0.0
        %539 = vmatpush2.msra.mxu0 0.0
        %540 = vmatprep.subr.mxu0 0.0
        %541 = vmatpush2.msra.mxu0 0.0
        %542 = vmatprep.subr.mxu0 0.0
        %543 = vmatpush2.msra.mxu0 0.0
        %544 = vmatprep.mubr.f32.mxu0 0.0
        %545 = vmatmul.mubr.f32.gmra.mxu0 %v402
        %v546 = vpop.f32.mrf.mxu0
        %v547 = vadd.f32 0.0, %v546
        %v548 = vpop.f32.mrf.mxu0
        %549 = vmatprep.mubr.f32.mxu0 0.0
        %550 = vmatmul.mubr.f32.gmra.mxu0 %v405
        %v551 = vpop.f32.mrf.mxu0
        %v552 = vadd.f32 0.0, %v551
        %v553 = vpop.f32.mrf.mxu0
        %554 = vmatprep.mubr.f32.mxu0 0.0
        %555 = vmatmul.mubr.f32.gmra.mxu0 %v410
        %v556 = vpop.f32.mrf.mxu0
        %v557 = vadd.f32 0.0, %v556
        %v558 = vpop.f32.mrf.mxu0
        %559 = vmatprep.mubr.f32.mxu0 0.0
        %560 = vmatmul.mubr.f32.gmra.mxu0 %v413
        %v561 = vpop.f32.mrf.mxu0
        %v562 = vadd.f32 0.0, %v561
        %v563 = vpop.f32.mrf.mxu0
        %564 = vmatprep.mubr.f32.mxu0 0.0
        %565 = vmatmul.mubr.f32.gmra.mxu0 %v418
        %v566 = vpop.f32.mrf.mxu0
        %v567 = vadd.f32 0.0, %v566
        %v568 = vpop.f32.mrf.mxu0
        %569 = vmatprep.mubr.f32.mxu0 0.0
        %570 = vmatmul.mubr.f32.gmra.mxu0 %v421
        %v571 = vpop.f32.mrf.mxu0
        %v572 = vadd.f32 0.0, %v571
        %v573 = vpop.f32.mrf.mxu0
        %574 = vmatprep.mubr.f32.mxu0 0.0
        %575 = vmatmul.mubr.f32.gmra.mxu0 %v426
        %v576 = vpop.f32.mrf.mxu0
        %v577 = vadd.f32 0.0, %v576
        %v578 = vpop.f32.mrf.mxu0
        %579 = vmatprep.mubr.f32.mxu0 0.0
        %580 = vmatmul.mubr.f32.gmra.mxu0 %v429
        %v581 = vpop.f32.mrf.mxu0
        %v582 = vadd.f32 0.0, %v581
        %v583 = vpop.f32.mrf.mxu0
        %584 = vmatprep.mubr.f32.mxu0 0.0
        %585 = vmatmul.mubr.f32.gmra.mxu0 %v434
        %v586 = vpop.f32.mrf.mxu0
        %v587 = vadd.f32 0.0, %v586
        %v588 = vpop.f32.mrf.mxu0
        %589 = vmatprep.mubr.f32.mxu0 0.0
        %590 = vmatmul.mubr.f32.gmra.mxu0 %v437
        %v591 = vpop.f32.mrf.mxu0
        %v592 = vadd.f32 0.0, %v591
        %v593 = vpop.f32.mrf.mxu0
        %594 = vmatprep.mubr.f32.mxu0 0.0
        %595 = vmatmul.mubr.f32.gmra.mxu0 %v442
        %v596 = vpop.f32.mrf.mxu0
        %v597 = vadd.f32 0.0, %v596
        %v598 = vpop.f32.mrf.mxu0
        %599 = vmatprep.mubr.f32.mxu0 0.0
        %600 = vmatmul.mubr.f32.gmra.mxu0 %v445
        %v601 = vpop.f32.mrf.mxu0
        %v602 = vadd.f32 0.0, %v601
        %v603 = vpop.f32.mrf.mxu0
        %604 = vmatprep.mubr.f32.mxu0 0.0
        %605 = vmatmul.mubr.f32.gmra.mxu0 %v450
        %v606 = vpop.f32.mrf.mxu0
        %v607 = vadd.f32 0.0, %v606
        %v608 = vpop.f32.mrf.mxu0
        %609 = vmatprep.mubr.f32.mxu0 0.0
        %610 = vmatmul.mubr.f32.gmra.mxu0 %v453
        %v611 = vpop.f32.mrf.mxu0
        %v612 = vadd.f32 0.0, %v611
        %v613 = vpop.f32.mrf.mxu0
        %614 = vmatprep.mubr.f32.mxu0 0.0
        %615 = vmatmul.mubr.f32.gmra.mxu0 %v458
        %v616 = vpop.f32.mrf.mxu0
        %v617 = vadd.f32 0.0, %v616
        %v618 = vpop.f32.mrf.mxu0
        %619 = vmatprep.mubr.f32.mxu0 0.0
        %620 = vmatmul.mubr.f32.gmra.mxu0 %v461
        %v621 = vpop.f32.mrf.mxu0
        %v622 = vadd.f32 0.0, %v621
        %v623 = vpop.f32.mrf.mxu0
        %624 = vdwg.mxu0
        %v625 = vld [vmem:[%s3] sm:$0xff]
        %v626 = vld [vmem:[%s3 + $0x8] sm:$0xff]
        %v627 = vld [vmem:[%s3 + $0x10] sm:$0xff]
        %v628 = vld [vmem:[%s3 + $0x18] sm:$0xff]
        %vm629 = vcmask 261120
        %v631 = vsel %vm629, %v547, 0
        %v634 = vsel %vm629, %v552, 0
        %v637 = vsel %vm629, %v557, 0
        %v640 = vsel %vm629, %v562, 0
        %v643 = vsel %vm629, %v567, 0
        %v646 = vsel %vm629, %v572, 0
        %v649 = vsel %vm629, %v577, 0
        %v652 = vsel %vm629, %v582, 0
        %v655 = vsel %vm629, %v587, 0
        %v658 = vsel %vm629, %v592, 0
        %v661 = vsel %vm629, %v597, 0
        %v664 = vsel %vm629, %v602, 0
        %v667 = vsel %vm629, %v607, 0
        %v670 = vsel %vm629, %v612, 0
        %v673 = vsel %vm629, %v617, 0
        %v676 = vsel %vm629, %v622, 0
        %678 = vmatprep.subr.mxu0 0.0
        %679 = vmatpush1.msra.mxu0 0.0
        %680 = vmatprep.subr.mxu0 0.0
        %681 = vmatpush1.msra.mxu0 0.0
        %682 = vmatprep.subr.mxu0 0.0
        %683 = vmatpush1.msra.mxu0 0.0
        %684 = vmatprep.subr.mxu0 0.0
        %685 = vmatpush1.msra.mxu0 0.0
        %686 = vmatprep.subr.mxu0 0.0
        %687 = vmatpush1.msra.mxu0 0.0
        %688 = vmatprep.subr.mxu0 0.0
        %689 = vmatpush1.msra.mxu0 0.0
        %690 = vmatprep.subr.mxu0 0.0
        %691 = vmatpush1.msra.mxu0 0.0
        %692 = vmatprep.subr.mxu0 0.0
        %693 = vmatpush1.msra.mxu0 0.0
        %694 = vmatprep.subr.mxu0 0.0
        %695 = vmatpush1.msra.mxu0 0.0
        %696 = vmatprep.subr.mxu0 0.0
        %697 = vmatpush1.msra.mxu0 0.0
        %698 = vmatprep.subr.mxu0 0.0
        %699 = vmatpush1.msra.mxu0 0.0
        %700 = vmatprep.subr.mxu0 0.0
        %701 = vmatpush1.msra.mxu0 0.0
        %702 = vmatprep.subr.mxu0 0.0
        %703 = vmatpush1.msra.mxu0 %v628
        %704 = vmatprep.subr.mxu0 0.0
        %705 = vmatpush1.msra.mxu0 %v627
        %706 = vmatprep.subr.mxu0 0.0
        %707 = vmatpush1.msra.mxu0 %v626
        %708 = vmatprep.subr.mxu0 0.0
        %709 = vmatpush1.msra.mxu0 %v625
        %710 = vmatprep.subr.mxu0 0.0
        %711 = vmatpush2.msra.mxu0 0.0
        %712 = vmatprep.subr.mxu0 0.0
        %713 = vmatpush2.msra.mxu0 0.0
        %714 = vmatprep.subr.mxu0 0.0
        %715 = vmatpush2.msra.mxu0 0.0
        %716 = vmatprep.subr.mxu0 0.0
        %717 = vmatpush2.msra.mxu0 0.0
        %718 = vmatprep.subr.mxu0 0.0
        %719 = vmatpush2.msra.mxu0 0.0
        %720 = vmatprep.subr.mxu0 0.0
        %721 = vmatpush2.msra.mxu0 0.0
        %722 = vmatprep.subr.mxu0 0.0
        %723 = vmatpush2.msra.mxu0 0.0
        %724 = vmatprep.subr.mxu0 0.0
        %725 = vmatpush2.msra.mxu0 0.0
        %726 = vmatprep.subr.mxu0 0.0
        %727 = vmatpush2.msra.mxu0 0.0
        %728 = vmatprep.subr.mxu0 0.0
        %729 = vmatpush2.msra.mxu0 0.0
        %730 = vmatprep.subr.mxu0 0.0
        %731 = vmatpush2.msra.mxu0 0.0
        %732 = vmatprep.subr.mxu0 0.0
        %733 = vmatpush2.msra.mxu0 0.0
        %734 = vmatprep.subr.mxu0 0.0
        %735 = vmatpush2.msra.mxu0 0.0
        %736 = vmatprep.subr.mxu0 0.0
        %737 = vmatpush2.msra.mxu0 0.0
        %738 = vmatprep.subr.mxu0 0.0
        %739 = vmatpush2.msra.mxu0 0.0
        %740 = vmatprep.subr.mxu0 0.0
        %741 = vmatpush2.msra.mxu0 0.0
        %742 = vmatprep.mubr.f32.mxu0 0.0
        %743 = vmatmul.mubr.f32.gmra.mxu0 %v631
        %v744 = vpop.f32.mrf.mxu0
        %v745 = vadd.f32 0.0, %v744
        %v746 = vpop.f32.mrf.mxu0
        %747 = vmatprep.mubr.f32.mxu0 0.0
        %748 = vmatmul.mubr.f32.gmra.mxu0 %v634
        %v749 = vpop.f32.mrf.mxu0
        %v750 = vadd.f32 0.0, %v749
        %v751 = vpop.f32.mrf.mxu0
        %752 = vmatprep.mubr.f32.mxu0 0.0
        %753 = vmatmul.mubr.f32.gmra.mxu0 %v637
        %v754 = vpop.f32.mrf.mxu0
        %v755 = vadd.f32 0.0, %v754
        %v756 = vpop.f32.mrf.mxu0
        %757 = vmatprep.mubr.f32.mxu0 0.0
        %758 = vmatmul.mubr.f32.gmra.mxu0 %v640
        %v759 = vpop.f32.mrf.mxu0
        %v760 = vadd.f32 0.0, %v759
        %v761 = vpop.f32.mrf.mxu0
        %762 = vmatprep.mubr.f32.mxu0 0.0
        %763 = vmatmul.mubr.f32.gmra.mxu0 %v643
        %v764 = vpop.f32.mrf.mxu0
        %v765 = vadd.f32 0.0, %v764
        %v766 = vpop.f32.mrf.mxu0
        %767 = vmatprep.mubr.f32.mxu0 0.0
        %768 = vmatmul.mubr.f32.gmra.mxu0 %v646
        %v769 = vpop.f32.mrf.mxu0
        %v770 = vadd.f32 0.0, %v769
        %v771 = vpop.f32.mrf.mxu0
        %772 = vmatprep.mubr.f32.mxu0 0.0
        %773 = vmatmul.mubr.f32.gmra.mxu0 %v649
        %v774 = vpop.f32.mrf.mxu0
        %v775 = vadd.f32 0.0, %v774
        %v776 = vpop.f32.mrf.mxu0
        %777 = vmatprep.mubr.f32.mxu0 0.0
        %778 = vmatmul.mubr.f32.gmra.mxu0 %v652
        %v779 = vpop.f32.mrf.mxu0
        %v780 = vadd.f32 0.0, %v779
        %v781 = vpop.f32.mrf.mxu0
        %782 = vmatprep.mubr.f32.mxu0 0.0
        %783 = vmatmul.mubr.f32.gmra.mxu0 %v655
        %v784 = vpop.f32.mrf.mxu0
        %v785 = vadd.f32 0.0, %v784
        %v786 = vpop.f32.mrf.mxu0
        %787 = vmatprep.mubr.f32.mxu0 0.0
        %788 = vmatmul.mubr.f32.gmra.mxu0 %v658
        %v789 = vpop.f32.mrf.mxu0
        %v790 = vadd.f32 0.0, %v789
        %v791 = vpop.f32.mrf.mxu0
        %792 = vmatprep.mubr.f32.mxu0 0.0
        %793 = vmatmul.mubr.f32.gmra.mxu0 %v661
        %v794 = vpop.f32.mrf.mxu0
        %v795 = vadd.f32 0.0, %v794
        %v796 = vpop.f32.mrf.mxu0
        %797 = vmatprep.mubr.f32.mxu0 0.0
        %798 = vmatmul.mubr.f32.gmra.mxu0 %v664
        %v799 = vpop.f32.mrf.mxu0
        %v800 = vadd.f32 0.0, %v799
        %v801 = vpop.f32.mrf.mxu0
        %802 = vmatprep.mubr.f32.mxu0 0.0
        %803 = vmatmul.mubr.f32.gmra.mxu0 %v667
        %v804 = vpop.f32.mrf.mxu0
        %v805 = vadd.f32 0.0, %v804
        %v806 = vpop.f32.mrf.mxu0
        %807 = vmatprep.mubr.f32.mxu0 0.0
        %808 = vmatmul.mubr.f32.gmra.mxu0 %v670
        %v809 = vpop.f32.mrf.mxu0
        %v810 = vadd.f32 0.0, %v809
        %v811 = vpop.f32.mrf.mxu0
        %812 = vmatprep.mubr.f32.mxu0 0.0
        %813 = vmatmul.mubr.f32.gmra.mxu0 %v673
        %v814 = vpop.f32.mrf.mxu0
        %v815 = vadd.f32 0.0, %v814
        %v816 = vpop.f32.mrf.mxu0
        %817 = vmatprep.mubr.f32.mxu0 0.0
        %818 = vmatmul.mubr.f32.gmra.mxu0 %v676
        %v819 = vpop.f32.mrf.mxu0
        %v820 = vadd.f32 0.0, %v819
        %v821 = vpop.f32.mrf.mxu0
        %822 = vdwg.mxu0
        %v823 = vsub.f32 %v402, %v745
        %v824 = vsub.f32 %v405, %v750
        %v825 = vsub.f32 %v410, %v755
        %v826 = vsub.f32 %v413, %v760
        %v827 = vsub.f32 %v418, %v765
        %v828 = vsub.f32 %v421, %v770
        %v829 = vsub.f32 %v426, %v775
        %v830 = vsub.f32 %v429, %v780
        %v831 = vsub.f32 %v434, %v785
        %v832 = vsub.f32 %v437, %v790
        %v833 = vsub.f32 %v442, %v795
        %v834 = vsub.f32 %v445, %v800
        %v835 = vsub.f32 %v450, %v805
        %v836 = vsub.f32 %v453, %v810
        %v837 = vsub.f32 %v458, %v815
        %v838 = vsub.f32 %v461, %v820
        %v839 = vmul.f32 %v823, %v823
        %v840 = vmul.f32 %v824, %v824
        %v841 = vmul.f32 %v825, %v825
        %v842 = vmul.f32 %v826, %v826
        %v843 = vmul.f32 %v827, %v827
        %v844 = vmul.f32 %v828, %v828
        %v845 = vmul.f32 %v829, %v829
        %v846 = vmul.f32 %v830, %v830
        %v847 = vmul.f32 %v831, %v831
        %v848 = vmul.f32 %v832, %v832
        %v849 = vmul.f32 %v833, %v833
        %v850 = vmul.f32 %v834, %v834
        %v851 = vmul.f32 %v835, %v835
        %v852 = vmul.f32 %v836, %v836
        %v853 = vmul.f32 %v837, %v837
        %v854 = vmul.f32 %v838, %v838
        %855 = vmatprep.subr.mxu0 0.0
        %856 = vmatpush1.msra.mxu0 %v479
        %857 = vmatprep.subr.mxu0 0.0
        %858 = vmatpush1.msra.mxu0 %v478
        %859 = vmatprep.subr.mxu0 0.0
        %860 = vmatpush1.msra.mxu0 %v477
        %861 = vmatprep.subr.mxu0 0.0
        %862 = vmatpush1.msra.mxu0 %v476
        %863 = vmatprep.subr.mxu0 0.0
        %864 = vmatpush1.msra.mxu0 %v475
        %865 = vmatprep.subr.mxu0 0.0
        %866 = vmatpush1.msra.mxu0 %v474
        %867 = vmatprep.subr.mxu0 0.0
        %868 = vmatpush1.msra.mxu0 %v473
        %869 = vmatprep.subr.mxu0 0.0
        %870 = vmatpush1.msra.mxu0 %v472
        %871 = vmatprep.subr.mxu0 0.0
        %872 = vmatpush1.msra.mxu0 %v471
        %873 = vmatprep.subr.mxu0 0.0
        %874 = vmatpush1.msra.mxu0 %v470
        %875 = vmatprep.subr.mxu0 0.0
        %876 = vmatpush1.msra.mxu0 %v469
        %877 = vmatprep.subr.mxu0 0.0
        %878 = vmatpush1.msra.mxu0 %v468
        %879 = vmatprep.subr.mxu0 0.0
        %880 = vmatpush1.msra.mxu0 %v467
        %881 = vmatprep.subr.mxu0 0.0
        %882 = vmatpush1.msra.mxu0 %v466
        %883 = vmatprep.subr.mxu0 0.0
        %884 = vmatpush1.msra.mxu0 %v465
        %885 = vmatprep.subr.mxu0 0.0
        %886 = vmatpush1.msra.mxu0 %v464
        %887 = vmatprep.subr.mxu0 0.0
        %888 = vmatpush2.msra.mxu0 0.0
        %889 = vmatprep.subr.mxu0 0.0
        %890 = vmatpush2.msra.mxu0 0.0
        %891 = vmatprep.subr.mxu0 0.0
        %892 = vmatpush2.msra.mxu0 0.0
        %893 = vmatprep.subr.mxu0 0.0
        %894 = vmatpush2.msra.mxu0 0.0
        %895 = vmatprep.subr.mxu0 0.0
        %896 = vmatpush2.msra.mxu0 0.0
        %897 = vmatprep.subr.mxu0 0.0
        %898 = vmatpush2.msra.mxu0 0.0
        %899 = vmatprep.subr.mxu0 0.0
        %900 = vmatpush2.msra.mxu0 0.0
        %901 = vmatprep.subr.mxu0 0.0
        %902 = vmatpush2.msra.mxu0 0.0
        %903 = vmatprep.subr.mxu0 0.0
        %904 = vmatpush2.msra.mxu0 0.0
        %905 = vmatprep.subr.mxu0 0.0
        %906 = vmatpush2.msra.mxu0 0.0
        %907 = vmatprep.subr.mxu0 0.0
        %908 = vmatpush2.msra.mxu0 0.0
        %909 = vmatprep.subr.mxu0 0.0
        %910 = vmatpush2.msra.mxu0 0.0
        %911 = vmatprep.subr.mxu0 0.0
        %912 = vmatpush2.msra.mxu0 0.0
        %913 = vmatprep.subr.mxu0 0.0
        %914 = vmatpush2.msra.mxu0 0.0
        %915 = vmatprep.subr.mxu0 0.0
        %916 = vmatpush2.msra.mxu0 0.0
        %917 = vmatprep.subr.mxu0 0.0
        %918 = vmatpush2.msra.mxu0 0.0
        %919 = vmatprep.mubr.f32.mxu0 0.0
        %920 = vmatmul.mubr.f32.gmra.mxu0 %v839
        %v921 = vpop.f32.mrf.mxu0
        %v922 = vadd.f32 0.0, %v921
        %v923 = vpop.f32.mrf.mxu0
        %924 = vmatprep.mubr.f32.mxu0 0.0
        %925 = vmatmul.mubr.f32.gmra.mxu0 %v840
        %v926 = vpop.f32.mrf.mxu0
        %v927 = vadd.f32 0.0, %v926
        %v928 = vpop.f32.mrf.mxu0
        %929 = vmatprep.mubr.f32.mxu0 0.0
        %930 = vmatmul.mubr.f32.gmra.mxu0 %v841
        %v931 = vpop.f32.mrf.mxu0
        %v932 = vadd.f32 0.0, %v931
        %v933 = vpop.f32.mrf.mxu0
        %934 = vmatprep.mubr.f32.mxu0 0.0
        %935 = vmatmul.mubr.f32.gmra.mxu0 %v842
        %v936 = vpop.f32.mrf.mxu0
        %v937 = vadd.f32 0.0, %v936
        %v938 = vpop.f32.mrf.mxu0
        %939 = vmatprep.mubr.f32.mxu0 0.0
        %940 = vmatmul.mubr.f32.gmra.mxu0 %v843
        %v941 = vpop.f32.mrf.mxu0
        %v942 = vadd.f32 0.0, %v941
        %v943 = vpop.f32.mrf.mxu0
        %944 = vmatprep.mubr.f32.mxu0 0.0
        %945 = vmatmul.mubr.f32.gmra.mxu0 %v844
        %v946 = vpop.f32.mrf.mxu0
        %v947 = vadd.f32 0.0, %v946
        %v948 = vpop.f32.mrf.mxu0
        %949 = vmatprep.mubr.f32.mxu0 0.0
        %950 = vmatmul.mubr.f32.gmra.mxu0 %v845
        %v951 = vpop.f32.mrf.mxu0
        %v952 = vadd.f32 0.0, %v951
        %v953 = vpop.f32.mrf.mxu0
        %954 = vmatprep.mubr.f32.mxu0 0.0
        %955 = vmatmul.mubr.f32.gmra.mxu0 %v846
        %v956 = vpop.f32.mrf.mxu0
        %v957 = vadd.f32 0.0, %v956
        %v958 = vpop.f32.mrf.mxu0
        %959 = vmatprep.mubr.f32.mxu0 0.0
        %960 = vmatmul.mubr.f32.gmra.mxu0 %v847
        %v961 = vpop.f32.mrf.mxu0
        %v962 = vadd.f32 0.0, %v961
        %v963 = vpop.f32.mrf.mxu0
        %964 = vmatprep.mubr.f32.mxu0 0.0
        %965 = vmatmul.mubr.f32.gmra.mxu0 %v848
        %v966 = vpop.f32.mrf.mxu0
        %v967 = vadd.f32 0.0, %v966
        %v968 = vpop.f32.mrf.mxu0
        %969 = vmatprep.mubr.f32.mxu0 0.0
        %970 = vmatmul.mubr.f32.gmra.mxu0 %v849
        %v971 = vpop.f32.mrf.mxu0
        %v972 = vadd.f32 0.0, %v971
        %v973 = vpop.f32.mrf.mxu0
        %974 = vmatprep.mubr.f32.mxu0 0.0
        %975 = vmatmul.mubr.f32.gmra.mxu0 %v850
        %v976 = vpop.f32.mrf.mxu0
        %v977 = vadd.f32 0.0, %v976
        %v978 = vpop.f32.mrf.mxu0
        %979 = vmatprep.mubr.f32.mxu0 0.0
        %980 = vmatmul.mubr.f32.gmra.mxu0 %v851
        %v981 = vpop.f32.mrf.mxu0
        %v982 = vadd.f32 0.0, %v981
        %v983 = vpop.f32.mrf.mxu0
        %984 = vmatprep.mubr.f32.mxu0 0.0
        %985 = vmatmul.mubr.f32.gmra.mxu0 %v852
        %v986 = vpop.f32.mrf.mxu0
        %v987 = vadd.f32 0.0, %v986
        %v988 = vpop.f32.mrf.mxu0
        %989 = vmatprep.mubr.f32.mxu0 0.0
        %990 = vmatmul.mubr.f32.gmra.mxu0 %v853
        %v991 = vpop.f32.mrf.mxu0
        %v992 = vadd.f32 0.0, %v991
        %v993 = vpop.f32.mrf.mxu0
        %994 = vmatprep.mubr.f32.mxu0 0.0
        %995 = vmatmul.mubr.f32.gmra.mxu0 %v854
        %v996 = vpop.f32.mrf.mxu0
        %v997 = vadd.f32 0.0, %v996
        %v998 = vpop.f32.mrf.mxu0
        %999 = vdwg.mxu0
        %v1000 = vmax.f32 %v922, 0.0
        %v1001 = vmax.f32 %v927, 0.0
        %v1002 = vmax.f32 %v932, 0.0
        %v1003 = vmax.f32 %v937, 0.0
        %v1004 = vmax.f32 %v942, 0.0
        %v1005 = vmax.f32 %v947, 0.0
        %v1006 = vmax.f32 %v952, 0.0
        %v1007 = vmax.f32 %v957, 0.0
        %v1008 = vmax.f32 %v962, 0.0
        %v1009 = vmax.f32 %v967, 0.0
        %v1010 = vmax.f32 %v972, 0.0
        %v1011 = vmax.f32 %v977, 0.0
        %v1012 = vmax.f32 %v982, 0.0
        %v1013 = vmax.f32 %v987, 0.0
        %v1014 = vmax.f32 %v992, 0.0
        %v1015 = vmax.f32 %v997, 0.0
        %v1016 = vadd.f32 %v1000, 1e-05
        %v1017 = vadd.f32 %v1001, 1e-05
        %v1018 = vadd.f32 %v1002, 1e-05
        %v1019 = vadd.f32 %v1003, 1e-05
        %v1020 = vadd.f32 %v1004, 1e-05
        %v1021 = vadd.f32 %v1005, 1e-05
        %v1022 = vadd.f32 %v1006, 1e-05
        %v1023 = vadd.f32 %v1007, 1e-05
        %v1024 = vadd.f32 %v1008, 1e-05
        %v1025 = vadd.f32 %v1009, 1e-05
        %v1026 = vadd.f32 %v1010, 1e-05
        %v1027 = vadd.f32 %v1011, 1e-05
        %v1028 = vadd.f32 %v1012, 1e-05
        %v1029 = vadd.f32 %v1013, 1e-05
        %v1030 = vadd.f32 %v1014, 1e-05
        %v1031 = vadd.f32 %v1015, 1e-05
        %v1032 = vrsqrt.pop %v1016
        %v1033 = vrsqrt.pop %v1017
        %v1034 = vrsqrt.pop %v1018
        %v1035 = vrsqrt.pop %v1019
        %v1036 = vrsqrt.pop %v1020
        %v1037 = vrsqrt.pop %v1021
        %v1038 = vrsqrt.pop %v1022
        %v1039 = vrsqrt.pop %v1023
        %v1040 = vrsqrt.pop %v1024
        %v1041 = vrsqrt.pop %v1025
        %v1042 = vrsqrt.pop %v1026
        %v1043 = vrsqrt.pop %v1027
        %v1044 = vrsqrt.pop %v1028
        %v1045 = vrsqrt.pop %v1029
        %v1046 = vrsqrt.pop %v1030
        %v1047 = vrsqrt.pop %v1031
        %v1049 = vsel %vm629, %v1032, 0
        %v1052 = vsel %vm629, %v1033, 0
        %v1055 = vsel %vm629, %v1034, 0
        %v1058 = vsel %vm629, %v1035, 0
        %v1061 = vsel %vm629, %v1036, 0
        %v1064 = vsel %vm629, %v1037, 0
        %v1067 = vsel %vm629, %v1038, 0
        %v1070 = vsel %vm629, %v1039, 0
        %v1073 = vsel %vm629, %v1040, 0
        %v1076 = vsel %vm629, %v1041, 0
        %v1079 = vsel %vm629, %v1042, 0
        %v1082 = vsel %vm629, %v1043, 0
        %v1085 = vsel %vm629, %v1044, 0
        %v1088 = vsel %vm629, %v1045, 0
        %v1091 = vsel %vm629, %v1046, 0
        %v1094 = vsel %vm629, %v1047, 0
        %1096 = vmatprep.subr.mxu0 0.0
        %1097 = vmatpush1.msra.mxu0 0.0
        %1098 = vmatprep.subr.mxu0 0.0
        %1099 = vmatpush1.msra.mxu0 0.0
        %1100 = vmatprep.subr.mxu0 0.0
        %1101 = vmatpush1.msra.mxu0 0.0
        %1102 = vmatprep.subr.mxu0 0.0
        %1103 = vmatpush1.msra.mxu0 0.0
        %1104 = vmatprep.subr.mxu0 0.0
        %1105 = vmatpush1.msra.mxu0 0.0
        %1106 = vmatprep.subr.mxu0 0.0
        %1107 = vmatpush1.msra.mxu0 0.0
        %1108 = vmatprep.subr.mxu0 0.0
        %1109 = vmatpush1.msra.mxu0 0.0
        %1110 = vmatprep.subr.mxu0 0.0
        %1111 = vmatpush1.msra.mxu0 0.0
        %1112 = vmatprep.subr.mxu0 0.0
        %1113 = vmatpush1.msra.mxu0 0.0
        %1114 = vmatprep.subr.mxu0 0.0
        %1115 = vmatpush1.msra.mxu0 0.0
        %1116 = vmatprep.subr.mxu0 0.0
        %1117 = vmatpush1.msra.mxu0 0.0
        %1118 = vmatprep.subr.mxu0 0.0
        %1119 = vmatpush1.msra.mxu0 0.0
        %1120 = vmatprep.subr.mxu0 0.0
        %1121 = vmatpush1.msra.mxu0 %v628
        %1122 = vmatprep.subr.mxu0 0.0
        %1123 = vmatpush1.msra.mxu0 %v627
        %1124 = vmatprep.subr.mxu0 0.0
        %1125 = vmatpush1.msra.mxu0 %v626
        %1126 = vmatprep.subr.mxu0 0.0
        %1127 = vmatpush1.msra.mxu0 %v625
        %1128 = vmatprep.subr.mxu0 0.0
        %1129 = vmatpush2.msra.mxu0 0.0
        %1130 = vmatprep.subr.mxu0 0.0
        %1131 = vmatpush2.msra.mxu0 0.0
        %1132 = vmatprep.subr.mxu0 0.0
        %1133 = vmatpush2.msra.mxu0 0.0
        %1134 = vmatprep.subr.mxu0 0.0
        %1135 = vmatpush2.msra.mxu0 0.0
        %1136 = vmatprep.subr.mxu0 0.0
        %1137 = vmatpush2.msra.mxu0 0.0
        %1138 = vmatprep.subr.mxu0 0.0
        %1139 = vmatpush2.msra.mxu0 0.0
        %1140 = vmatprep.subr.mxu0 0.0
        %1141 = vmatpush2.msra.mxu0 0.0
        %1142 = vmatprep.subr.mxu0 0.0
        %1143 = vmatpush2.msra.mxu0 0.0
        %1144 = vmatprep.subr.mxu0 0.0
        %1145 = vmatpush2.msra.mxu0 0.0
        %1146 = vmatprep.subr.mxu0 0.0
        %1147 = vmatpush2.msra.mxu0 0.0
        %1148 = vmatprep.subr.mxu0 0.0
        %1149 = vmatpush2.msra.mxu0 0.0
        %1150 = vmatprep.subr.mxu0 0.0
        %1151 = vmatpush2.msra.mxu0 0.0
        %1152 = vmatprep.subr.mxu0 0.0
        %1153 = vmatpush2.msra.mxu0 0.0
        %1154 = vmatprep.subr.mxu0 0.0
        %1155 = vmatpush2.msra.mxu0 0.0
        %1156 = vmatprep.subr.mxu0 0.0
        %1157 = vmatpush2.msra.mxu0 0.0
        %1158 = vmatprep.subr.mxu0 0.0
        %1159 = vmatpush2.msra.mxu0 0.0
        %1160 = vmatprep.mubr.f32.mxu0 0.0
        %1161 = vmatmul.mubr.f32.gmra.mxu0 %v1049
        %v1162 = vpop.f32.mrf.mxu0
        %v1163 = vadd.f32 0.0, %v1162
        %v1164 = vpop.f32.mrf.mxu0
        %1165 = vmatprep.mubr.f32.mxu0 0.0
        %1166 = vmatmul.mubr.f32.gmra.mxu0 %v1052
        %v1167 = vpop.f32.mrf.mxu0
        %v1168 = vadd.f32 0.0, %v1167
        %v1169 = vpop.f32.mrf.mxu0
        %1170 = vmatprep.mubr.f32.mxu0 0.0
        %1171 = vmatmul.mubr.f32.gmra.mxu0 %v1055
        %v1172 = vpop.f32.mrf.mxu0
        %v1173 = vadd.f32 0.0, %v1172
        %v1174 = vpop.f32.mrf.mxu0
        %1175 = vmatprep.mubr.f32.mxu0 0.0
        %1176 = vmatmul.mubr.f32.gmra.mxu0 %v1058
        %v1177 = vpop.f32.mrf.mxu0
        %v1178 = vadd.f32 0.0, %v1177
        %v1179 = vpop.f32.mrf.mxu0
        %1180 = vmatprep.mubr.f32.mxu0 0.0
        %1181 = vmatmul.mubr.f32.gmra.mxu0 %v1061
        %v1182 = vpop.f32.mrf.mxu0
        %v1183 = vadd.f32 0.0, %v1182
        %v1184 = vpop.f32.mrf.mxu0
        %1185 = vmatprep.mubr.f32.mxu0 0.0
        %1186 = vmatmul.mubr.f32.gmra.mxu0 %v1064
        %v1187 = vpop.f32.mrf.mxu0
        %v1188 = vadd.f32 0.0, %v1187
        %v1189 = vpop.f32.mrf.mxu0
        %1190 = vmatprep.mubr.f32.mxu0 0.0
        %1191 = vmatmul.mubr.f32.gmra.mxu0 %v1067
        %v1192 = vpop.f32.mrf.mxu0
        %v1193 = vadd.f32 0.0, %v1192
        %v1194 = vpop.f32.mrf.mxu0
        %1195 = vmatprep.mubr.f32.mxu0 0.0
        %1196 = vmatmul.mubr.f32.gmra.mxu0 %v1070
        %v1197 = vpop.f32.mrf.mxu0
        %v1198 = vadd.f32 0.0, %v1197
        %v1199 = vpop.f32.mrf.mxu0
        %1200 = vmatprep.mubr.f32.mxu0 0.0
        %1201 = vmatmul.mubr.f32.gmra.mxu0 %v1073
        %v1202 = vpop.f32.mrf.mxu0
        %v1203 = vadd.f32 0.0, %v1202
        %v1204 = vpop.f32.mrf.mxu0
        %1205 = vmatprep.mubr.f32.mxu0 0.0
        %1206 = vmatmul.mubr.f32.gmra.mxu0 %v1076
        %v1207 = vpop.f32.mrf.mxu0
        %v1208 = vadd.f32 0.0, %v1207
        %v1209 = vpop.f32.mrf.mxu0
        %1210 = vmatprep.mubr.f32.mxu0 0.0
        %1211 = vmatmul.mubr.f32.gmra.mxu0 %v1079
        %v1212 = vpop.f32.mrf.mxu0
        %v1213 = vadd.f32 0.0, %v1212
        %v1214 = vpop.f32.mrf.mxu0
        %1215 = vmatprep.mubr.f32.mxu0 0.0
        %1216 = vmatmul.mubr.f32.gmra.mxu0 %v1082
        %v1217 = vpop.f32.mrf.mxu0
        %v1218 = vadd.f32 0.0, %v1217
        %v1219 = vpop.f32.mrf.mxu0
        %1220 = vmatprep.mubr.f32.mxu0 0.0
        %1221 = vmatmul.mubr.f32.gmra.mxu0 %v1085
        %v1222 = vpop.f32.mrf.mxu0
        %v1223 = vadd.f32 0.0, %v1222
        %v1224 = vpop.f32.mrf.mxu0
        %1225 = vmatprep.mubr.f32.mxu0 0.0
        %1226 = vmatmul.mubr.f32.gmra.mxu0 %v1088
        %v1227 = vpop.f32.mrf.mxu0
        %v1228 = vadd.f32 0.0, %v1227
        %v1229 = vpop.f32.mrf.mxu0
        %1230 = vmatprep.mubr.f32.mxu0 0.0
        %1231 = vmatmul.mubr.f32.gmra.mxu0 %v1091
        %v1232 = vpop.f32.mrf.mxu0
        %v1233 = vadd.f32 0.0, %v1232
        %v1234 = vpop.f32.mrf.mxu0
        %1235 = vmatprep.mubr.f32.mxu0 0.0
        %1236 = vmatmul.mubr.f32.gmra.mxu0 %v1094
        %v1237 = vpop.f32.mrf.mxu0
        %v1238 = vadd.f32 0.0, %v1237
        %v1239 = vpop.f32.mrf.mxu0
        %1240 = vdwg.mxu0
        %v1241 = vmul.f32 %v823, %v1163
        %v1242 = vmul.f32 %v824, %v1168
        %v1243 = vmul.f32 %v825, %v1173
        %v1244 = vmul.f32 %v826, %v1178
        %v1245 = vmul.f32 %v827, %v1183
        %v1246 = vmul.f32 %v828, %v1188
        %v1247 = vmul.f32 %v829, %v1193
        %v1248 = vmul.f32 %v830, %v1198
        %v1249 = vmul.f32 %v831, %v1203
        %v1250 = vmul.f32 %v832, %v1208
        %v1251 = vmul.f32 %v833, %v1213
        %v1252 = vmul.f32 %v834, %v1218
        %v1253 = vmul.f32 %v835, %v1223
        %v1254 = vmul.f32 %v836, %v1228
        %v1255 = vmul.f32 %v837, %v1233
        %v1256 = vmul.f32 %v838, %v1238
        %v1257 = vld [vmem:[%s4] sm:$0x1]
        %v1259 = vlaneseq
        %v1260 = vshrl.u32 %v1259, 7
        %v1261 = vsub.s32 0, %v1260
        %v1262 = vrot.slane %v1257, %v1261
        %v1264 = vmul.f32 %v1241, %v1262
        %v1265 = vmul.f32 %v1242, %v1262
        %v1266 = vmul.f32 %v1243, %v1262
        %v1267 = vmul.f32 %v1244, %v1262
        %v1268 = vmul.f32 %v1245, %v1262
        %v1269 = vmul.f32 %v1246, %v1262
        %v1270 = vmul.f32 %v1247, %v1262
        %v1271 = vmul.f32 %v1248, %v1262
        %v1272 = vmul.f32 %v1249, %v1262
        %v1273 = vmul.f32 %v1250, %v1262
        %v1274 = vmul.f32 %v1251, %v1262
        %v1275 = vmul.f32 %v1252, %v1262
        %v1276 = vmul.f32 %v1253, %v1262
        %v1277 = vmul.f32 %v1254, %v1262
        %v1278 = vmul.f32 %v1255, %v1262
        %v1279 = vmul.f32 %v1256, %v1262
        %v1280 = vld [vmem:[%s5] sm:$0x1]
        %v1282 = vlaneseq
        %v1283 = vshrl.u32 %v1282, 7
        %v1284 = vsub.s32 0, %v1283
        %v1285 = vrot.slane %v1280, %v1284
        %v1287 = vadd.f32 %v1264, %v1285
        %v1288 = vadd.f32 %v1265, %v1285
        %v1289 = vadd.f32 %v1266, %v1285
        %v1290 = vadd.f32 %v1267, %v1285
        %v1291 = vadd.f32 %v1268, %v1285
        %v1292 = vadd.f32 %v1269, %v1285
        %v1293 = vadd.f32 %v1270, %v1285
        %v1294 = vadd.f32 %v1271, %v1285
        %v1295 = vadd.f32 %v1272, %v1285
        %v1296 = vadd.f32 %v1273, %v1285
        %v1297 = vadd.f32 %v1274, %v1285
        %v1298 = vadd.f32 %v1275, %v1285
        %v1299 = vadd.f32 %v1276, %v1285
        %v1300 = vadd.f32 %v1277, %v1285
        %v1301 = vadd.f32 %v1278, %v1285
        %v1302 = vadd.f32 %v1279, %v1285
        %v1303 = vmax.f32 %v1287, 0.0
        %v1304 = vmax.f32 %v1288, 0.0
        %v1305 = vmax.f32 %v1289, 0.0
        %v1306 = vmax.f32 %v1290, 0.0
        %v1307 = vmax.f32 %v1291, 0.0
        %v1308 = vmax.f32 %v1292, 0.0
        %v1309 = vmax.f32 %v1293, 0.0
        %v1310 = vmax.f32 %v1294, 0.0
        %v1311 = vmax.f32 %v1295, 0.0
        %v1312 = vmax.f32 %v1296, 0.0
        %v1313 = vmax.f32 %v1297, 0.0
        %v1314 = vmax.f32 %v1298, 0.0
        %v1315 = vmax.f32 %v1299, 0.0
        %v1316 = vmax.f32 %v1300, 0.0
        %v1317 = vmax.f32 %v1301, 0.0
        %v1318 = vmax.f32 %v1302, 0.0
        %1319 = vst [vmem:[%s245] sm:$0xff] %v1303
        %1320 = vst [vmem:[%s245 + $0x8] sm:$0xff] %v1304
        %1321 = vst [vmem:[%s245 + $0x10] sm:$0xff] %v1305
        %1322 = vst [vmem:[%s245 + $0x18] sm:$0xff] %v1306
        %1323 = vst [vmem:[%s245 + $0x20] sm:$0xff] %v1307
        %1324 = vst [vmem:[%s245 + $0x28] sm:$0xff] %v1308
        %1325 = vst [vmem:[%s245 + $0x30] sm:$0xff] %v1309
        %1326 = vst [vmem:[%s245 + $0x38] sm:$0xff] %v1310
        %1327 = vst [vmem:[%s245 + $0x40] sm:$0xff] %v1311
        %1328 = vst [vmem:[%s245 + $0x48] sm:$0xff] %v1312
        %1329 = vst [vmem:[%s245 + $0x50] sm:$0xff] %v1313
        %1330 = vst [vmem:[%s245 + $0x58] sm:$0xff] %v1314
        %1331 = vst [vmem:[%s245 + $0x60] sm:$0xff] %v1315
        %1332 = vst [vmem:[%s245 + $0x68] sm:$0xff] %v1316
        %1333 = vst [vmem:[%s245 + $0x70] sm:$0xff] %v1317
        %1334 = vst [vmem:[%s245 + $0x78] sm:$0xff] %v1318
        %s1335 = sand.u32 %s159, 1
        %s1336 = scalar_lea.sflag [#allocation3], %s1335
        %s1337 = sand.u32 %s159, 1
        %s1338 = smul.addr %s1337, 128
        %s1339 = scalar_lea.vmem [#allocation2], %s1338
        // Predicated region
        $region45: #{tpu_custom_call.1} parent=43 // pred_check
          %p1340 = pneg %p169
        $region46: #{tpu_custom_call.1} parent=43 // pred_check_branch
          %1342 = sbr.rel (%p1340) target = $region48
        $region47: #{tpu_custom_call.1} parent=43 // pred_region
          %s1343 = smul.u32 16, %s20
          %s1345 = ssub.s32 2048, 2048
          %1346 = vsyncadd %s1336, %s1345
          %s1347 = smul.addr %s1343, 128
          %s1348 = scalar_lea.hbm %s6, %s1347
          %s1349 = sshll.u32 %s1339, 4
          %s1350 = int_to_ptr.vmem [resolvable:$true] %s1349
          %1355 = dma.vmem_to_hbm [thread:$0]  %s1350, 2048, %s1348, %s1336, 128, 128, 8
        $region48: #{tpu_custom_call.1} parent=43 // pred_fallthru
          _
      $region44: #{tpu_custom_call.1} parent=5 // pred_fallthru
        _
      %p1356 = scmp.le.s32.totalorder 2, %s15
      // Predicated region
      $region49: #{tpu_custom_call.1} parent=5 // pred_check
        %p1357 = pneg %p1356
      $region50: #{tpu_custom_call.1} parent=5 // pred_check_branch
        %1359 = sbr.rel (%p1357) target = $region52
      $region51: #{tpu_custom_call.1} parent=5 // pred_region
        %s1360 = ssub.s32 %s15, 2
        // Predicated region
        $region53: #{tpu_custom_call.1} parent=51 // pred_check
          %p1361 = pneg %p175
        $region54: #{tpu_custom_call.1} parent=51 // pred_check_branch
          %1363 = sbr.rel (%p1361) target = $region56
        $region55: #{tpu_custom_call.1} parent=51 // pred_region
          %s1364 = sand.u32 %s160, 1
          %s1365 = scalar_lea.sflag [#allocation3], %s1364
          %s1366 = sand.u32 %s160, 1
          %s1367 = smul.addr %s1366, 128
          %s1368 = scalar_lea.vmem [#allocation2], %s1367
          %1369 = dma.done %s1365, 2048
        $region56: #{tpu_custom_call.1} parent=51 // pred_fallthru
          _
      $region52: #{tpu_custom_call.1} parent=5 // pred_fallthru
        _
    $region6: #{tpu_custom_call.1} parent=1 // loop_footer
      %s19 = sadd.s32 1, %s15
    $region7: #{tpu_custom_call.1} parent=1 // loop_footer_branch
      %14 = sbr.rel target = $region3
    $region8: #{tpu_custom_call.1} parent=1 // loop_exit
      _
    %1370 = vsyncpa [#allocation3], 1
    %s1371 = scalar_lea.sflag [#allocation3], 1
    %1372 = vsyncpa %s1371, 1

</llo_original>
